<compile_context>
chip_gen: v7x
topology: tpu7x:2x2x1
jax: 0.10.0
libtpu: 0.0.40
codegen_flags: <defaults>
</compile_context>

<pallas_src>
import jax
import jax.numpy as jnp
from jax.experimental import pallas as pl
from jax.experimental.pallas import tpu as pltpu


def _round_up(x, m):
    return ((x + m - 1) // m) * m


def _linear_kernel(r_ref, w_ref, b_ref, o_ref):
    # r_ref: (tb, P) VMEM tile streamed over the batch grid axis.
    # w_ref: (1, P)  VMEM, resident across all grid steps.
    # b_ref: (1, 1)  SMEM scalar.
    # o_ref: (tb, 1) VMEM output tile (written straight to the (B, 1) result).
    r = r_ref[...].astype(jnp.float32)
    w = w_ref[...].astype(jnp.float32)              # broadcast over sublanes (VPU)
    acc = jnp.sum(r * w, axis=-1, keepdims=True)    # lane reduce (XLU) -> (tb, 1)
    o_ref[...] = (acc + b_ref[0, 0]).astype(o_ref.dtype)


def only_pair_feature(x1, x2, r, w, b):
    """Pallas TPU implementation of OnlyPairFeature.forward.

    x1, x2: ignored (kept for signature parity with the torch module).
    r: [B, pair_dim]
    w: torch Linear weight, shape [1, pair_dim] (also accepts [pair_dim, 1] / [pair_dim])
    b: torch Linear bias (any scalar-shaped array)
    returns: [B, 1], dtype of r
    """
    del x1, x2  # unused by the reference forward
    B, P = r.shape

    # Sublane multiple depends on dtype packing: f32 -> 8, bf16 -> 16, i8/fp8 -> 32.
    sub = 32 // jnp.dtype(r.dtype).itemsize

    if B <= sub:
        # Block == full array dim: always legal; single grid step.
        tb = B
    else:
        # Cap at ~2 MiB of r rows (4096 f32 rows); keep >= 2 grid steps so the
        # "parallel" batch axis can shard across v7x's two TensorCores.
        tb = min(4096, _round_up(-(-B // 2), sub), _round_up(B, sub))
        tb = max(tb, sub)
    grid = -(-B // tb)  # ragged last block: Pallas clamps the boundary DMAs

    w_row = jnp.reshape(w, (1, P))                       # tiny parameter, free-ish
    b_smem = jnp.reshape(b, (1, 1)).astype(jnp.float32)  # scalar -> SMEM

    return pl.pallas_call(
        _linear_kernel,
        out_shape=jax.ShapeDtypeStruct((B, 1), r.dtype),
        grid_spec=pltpu.PrefetchScalarGridSpec(
            num_scalar_prefetch=0,
            grid=(grid,),
            in_specs=[
                # r tile streams over the batch grid axis; last dim = full P.
                pl.BlockSpec((tb, P), lambda i: (i, 0)),
                # weight stays resident in VMEM across all grid steps.
                pl.BlockSpec((1, P), lambda i: (0, 0)),
                # bias lives in SMEM (scalar path), not a lane-padded VMEM tile.
                pl.BlockSpec(memory_space=pltpu.MemorySpace.SMEM),
            ],
            out_specs=pl.BlockSpec((tb, 1), lambda i: (i, 0)),
        ),
        compiler_params=pltpu.CompilerParams(
            dimension_semantics=("parallel",),   # batch tiles shard on v7x's 2 TCs
            vmem_limit_bytes=32 * 1024 * 1024,   # generous; worst case ~8 MiB used
        ),
    )(r, w_row, b_smem)


if __name__ == "__main__":
    key = jax.random.PRNGKey(0)
    k_x1, k_x2, k_r, k_w, k_b = jax.random.split(key, 5)

    B = 8          # batch of pairs
    feat_dim = 16  # dim of x1/x2 (unused by forward)
    pair_dim = 32  # pair feature dimension

    x1 = jax.random.normal(k_x1, (B, feat_dim), dtype=jnp.float32)
    x2 = jax.random.normal(k_x2, (B, feat_dim), dtype=jnp.float32)
    r = jax.random.normal(k_r, (B, pair_dim), dtype=jnp.float32)

    # Deterministic parameters in torch-native shapes:
    #   nn.Linear(pair_dim, 1): weight [1, pair_dim], bias [1].
    bound = 1.0 / (pair_dim ** 0.5)
    w = jax.random.uniform(
        k_w, (1, pair_dim), dtype=jnp.float32, minval=-bound, maxval=bound
    )
    b = jax.random.uniform(
        k_b, (1,), dtype=jnp.float32, minval=-bound, maxval=bound
    )

    out = jax.block_until_ready(only_pair_feature(x1, x2, r, w, b))

    # Sanity check vs. plain JAX reference.
    ref = r @ w.T + b
    assert out.shape == (B, 1)
    assert jnp.allclose(out, ref, atol=1e-5, rtol=1e-5)

    print("KERNEL_OK")
</pallas_src>

<mosaic_0001>
module attributes {stable_mosaic.version = 11 : i64} {
  func.func @_linear_kernel(%arg0: i32, %arg1: memref<8x32xf32, #tpu.memory_space<vmem>>, %arg2: memref<1x32xf32, #tpu.memory_space<vmem>>, %arg3: memref<1x1xf32, #tpu.memory_space<smem>>, %arg4: memref<8x1xf32, #tpu.memory_space<vmem>>) attributes {dimension_semantics = [#tpu.dimension_semantics<parallel>], iteration_bounds = array<i64: 1>, scalar_prefetch = 0 : i64, scratch_operands = 0 : i64, tpu.core_type = #tpu.core_type<tc>, window_params = [{transform_indices = @transform_0, window_bounds = array<i64: 8, 32>}, {pipeline_mode = #tpu.pipeline_mode<synchronous>, transform_indices = @transform_1, window_bounds = array<i64: 1, 32>}, {transform_indices = @transform_2, window_bounds = array<i64: 1, 1>}, {transform_indices = @transform_3, window_bounds = array<i64: 8, 1>}]} {
    %c0 = arith.constant 0 : index
    %c0_0 = arith.constant 0 : index
    %0 = vector.load %arg1[%c0, %c0_0] : memref<8x32xf32, #tpu.memory_space<vmem>>, vector<8x32xf32>
    %c0_1 = arith.constant 0 : index
    %c0_2 = arith.constant 0 : index
    %1 = vector.load %arg2[%c0_1, %c0_2] : memref<1x32xf32, #tpu.memory_space<vmem>>, vector<1x32xf32>
    %2 = vector.broadcast %1 : vector<1x32xf32> to vector<8x32xf32>
    %3 = arith.mulf %0, %2 : vector<8x32xf32>
    %cst = arith.constant dense<0.000000e+00> : vector<8xf32>
    %4 = vector.multi_reduction <add>, %3, %cst [1] : vector<8x32xf32> to vector<8xf32>
    %5 = vector.shape_cast %4 : vector<8xf32> to vector<8x1xf32>
    %c0_3 = arith.constant 0 : index
    %c0_4 = arith.constant 0 : index
    %6 = memref.load %arg3[%c0_3, %c0_4] : memref<1x1xf32, #tpu.memory_space<smem>>
    %7 = vector.broadcast %6 : f32 to vector<8x1xf32>
    %8 = arith.addf %5, %7 : vector<8x1xf32>
    %c0_5 = arith.constant 0 : index
    %c0_6 = arith.constant 0 : index
    %9 = vector.load %arg4[%c0_5, %c0_6] : memref<8x1xf32, #tpu.memory_space<vmem>>, vector<8x1xf32>
    tpu.vector_store %arg4[%c0_5, %c0_6], %8 {strides = array<i32>} : memref<8x1xf32, #tpu.memory_space<vmem>>, vector<8x1xf32>,
    return
  }
  func.func @transform_0(%arg0: i32) -> (i32, i32) {
    %c0_i32 = arith.constant 0 : i32
    %c0_i32_0 = arith.constant 0 : i32
    return %arg0, %c0_i32 : i32, i32
  }
  func.func @transform_1(%arg0: i32) -> (i32, i32) {
    %c0_i32 = arith.constant 0 : i32
    %c0_i32_0 = arith.constant 0 : i32
    %c0_i32_1 = arith.constant 0 : i32
    return %c0_i32, %c0_i32_0 : i32, i32
  }
  func.func @transform_2(%arg0: i32) -> (i32, i32) {
    %c0_i32 = arith.constant 0 : i32
    %c0_i32_0 = arith.constant 0 : i32
    %c0_i32_1 = arith.constant 0 : i32
    return %c0_i32, %c0_i32_0 : i32, i32
  }
  func.func @transform_3(%arg0: i32) -> (i32, i32) {
    %c0_i32 = arith.constant 0 : i32
    %c0_i32_0 = arith.constant 0 : i32
    return %arg0, %c0_i32 : i32, i32
  }
}

</mosaic_0001>

<llo_original>
// kernel: tpu_custom_call.1
$region0: #{tpu_custom_call.1}
  #allocation0 [shape = 'u32[]', space=smem, size = 0x4, offset = 0x4, fixed_abs, tag = 'smem constant byte address 0x4 - core index']
  #allocation1 [shape = 'u32[144,128]{1,0:T(1,128)}', space=vmem, size = 0x12000, scoped, tag = 'internal scratch']
  #allocation2 [shape = 'f32[1,1]{1,0:T(1,128)S(6)}', space=smem, size = 0x200, scoped, tag = 'scoped memory for tpu_custom_call.1']
  %s0 = inlined_call_operand.hbm [shape: f32[8,32], index: 0, kind: input, shape index: {}]
  %s1 = inlined_call_operand.vmem [shape: f32[1,32], index: 1, kind: input, shape index: {}]
  %s2 = inlined_call_operand.<no memory space> [shape: f32[1,1], index: 2, kind: input, shape index: {}]
  %s3 = inlined_call_operand.vmem [shape: f32[8,1], index: 3, kind: output, shape index: {}]
  %s4 = sld [smem:[#allocation0]]
  $region26: #{tpu_custom_call.1} parent=0
    _
  %s6 = ssub.s32 1, %s4
  %s7 = scalar_select 0, %s6, %s4
  %8 = sst [smem:[#allocation2]] %s2
  $region1: #{tpu_custom_call.1} parent=0
    #allocation3 [shape = 'u8[4096]{0}', space=vmem, size = 0x1000, scoped, tag = 'input window, operand 0, single buffered']
    #allocation4 [shape = 's32[1]{0}', space=sflag, size = 0x4, scoped, tag = 'scoped memory for tpu_custom_call.1']
    %9 = vsyncpa [#allocation4], 0
    // Predicated region
    $region2: #{tpu_custom_call.1} parent=1 // pred_check
      _
    $region3: #{tpu_custom_call.1} parent=1 // pred_check_branch
      %11 = sbr.rel (0) target = $region5
    $region4: #{tpu_custom_call.1} parent=1 // pred_region
      %s13 = ssub.s32 128, 128
      %14 = vsyncadd [#allocation4], %s13
      %s16 = sshll.u32 [#allocation3], 4
      %s17 = int_to_ptr.vmem [resolvable:$true] %s16
      %19 = dma.hbm_to_vmem [thread:$0]  %s0, 128, %s17, [#allocation4]
    $region5: #{tpu_custom_call.1} parent=1 // pred_fallthru
      _
    // Predicated region
    $region6: #{tpu_custom_call.1} parent=1 // pred_check
      _
    $region7: #{tpu_custom_call.1} parent=1 // pred_check_branch
      %21 = sbr.rel (0) target = $region9
    $region8: #{tpu_custom_call.1} parent=1 // pred_region
      _
    $region9: #{tpu_custom_call.1} parent=1 // pred_fallthru
      _
    // Predicated region
    $region10: #{tpu_custom_call.1} parent=1 // pred_check
      _
    $region11: #{tpu_custom_call.1} parent=1 // pred_check_branch
      %23 = sbr.rel (0) target = $region13
    $region12: #{tpu_custom_call.1} parent=1 // pred_region
      _
    $region13: #{tpu_custom_call.1} parent=1 // pred_fallthru
      _
    // Predicated region
    $region14: #{tpu_custom_call.1} parent=1 // pred_check
      _
    $region15: #{tpu_custom_call.1} parent=1 // pred_check_branch
      %25 = sbr.rel (0) target = $region17
    $region16: #{tpu_custom_call.1} parent=1 // pred_region
      %26 = dma.done [#allocation4], 128
    $region17: #{tpu_custom_call.1} parent=1 // pred_fallthru
      _
    %v27 = vld [vmem:[#allocation3] sm:$0xff]
    %v28 = vld [vmem:[%s1] sm:$0x1]
    %v30 = vlaneseq
    %v31 = vshrl.u32 %v30, 7
    %v32 = vsub.s32 0, %v31
    %v33 = vrot.slane %v28, %v32
    %v35 = vmul.f32 %v27, %v33
    %vm36 = vcmask 261120
    %v37 = vsel %vm36, %v35, 0.0
    %38 = vadd.xlane.f32.xlu0 %v37
    %v39 = vpop.xlane.xlu0 %38
    %s40 = sld [smem:[#allocation2]]
    %v41 = vstv %s40
    %v42 = vadd.f32 %v39, %v41
    %vm43 = vcmask 7168
    %44 = vst.msk [vmem:[%s3] sm:$0xff] %vm43, %v42
    // Predicated region
    $region18: #{tpu_custom_call.1} parent=1 // pred_check
      _
    $region19: #{tpu_custom_call.1} parent=1 // pred_check_branch
      %46 = sbr.rel (0) target = $region21
    $region20: #{tpu_custom_call.1} parent=1 // pred_region
      _
    $region21: #{tpu_custom_call.1} parent=1 // pred_fallthru
      _
    // Predicated region
    $region22: #{tpu_custom_call.1} parent=1 // pred_check
      _
    $region23: #{tpu_custom_call.1} parent=1 // pred_check_branch
      %48 = sbr.rel (0) target = $region25
    $region24: #{tpu_custom_call.1} parent=1 // pred_region
      _
    $region25: #{tpu_custom_call.1} parent=1 // pred_fallthru
      _
    %49 = vsyncpa [#allocation4], 1

</llo_original>
